<compile_context>
chip_gen: v6e
topology: v6e:2x2x1
jax: 0.10.0
libtpu: 0.0.40
codegen_flags: <defaults>
</compile_context>

<pallas_src>
import math
import functools

import jax
import jax.numpy as jnp
from jax.experimental import pallas as pl
from jax.experimental.pallas import tpu as pltpu

_MIB = 1024 * 1024


def _round_up(x, m):
    return ((x + m - 1) // m) * m


def _gelu_erf(x):
    # exact (erf-based) gelu, matching torch.nn.functional.gelu default
    return 0.5 * x * (1.0 + jax.lax.erf(x * (1.0 / math.sqrt(2.0))))


def _sublane(dtype):
    # sublane packing of the second-minor dim: f32 -> 8, bf16 -> 16, int8/fp8 -> 32
    return max(8, 8 * (4 // max(1, jnp.dtype(dtype).itemsize)))


def _vmem_capacity_bytes():
    # Physical VMEM per TensorCore; conservative (v7x-sized) fallback if the
    # query is unavailable.
    try:
        cap = int(getattr(pltpu.get_tpu_info(), "vmem_capacity_bytes", 0))
        if cap > 0:
            return cap
    except Exception:
        pass
    return 64 * _MIB


# ---------------------------------------------------------------------------
# Kernel A: h = LayerNorm(gelu(features @ dense_w.T + dense_b))
#   grid = (token tiles, H-contraction tiles); H axis is a reduction.
# ---------------------------------------------------------------------------
def dense_gelu_ln_kernel(x_ref, wd_ref, bd_ref, gamma_ref, beta_ref, h_ref, acc_ref):
    # x_ref:     (tm, th)  token tile x H-chunk (compute dtype)
    # wd_ref:    (E, th)   dense weight chunk, PyTorch layout (no wrapper transpose)
    # bd_ref:    (1, E)    dense bias (f32)
    # gamma_ref: (1, E)    LayerNorm scale (f32)
    # beta_ref:  (1, E)    LayerNorm shift (f32)
    # h_ref:     (tm, E)   output activations (compute dtype)
    # acc_ref:   (tm, E)   f32 accumulator scratch
    k = pl.program_id(1)

    @pl.when(k == 0)
    def _():
        acc_ref[...] = jnp.zeros_like(acc_ref)

    # Contract the trailing (H-chunk) dims so the untransposed [E, H] weight
    # feeds the MXU directly; f32 accumulation.
    acc_ref[...] += jax.lax.dot_general(
        x_ref[...], wd_ref[...],
        dimension_numbers=(((1,), (1,)), ((), ())),
        preferred_element_type=jnp.float32)

    @pl.when(k == pl.num_programs(1) - 1)
    def _():
        h = acc_ref[...] + bd_ref[...]
        h = _gelu_erf(h)
        # LayerNorm over embed_dim, eps=1e-5, elementwise affine (all f32),
        # cast once on the final write (h_ref dtype == embedding dtype).
        mu = jnp.mean(h, axis=-1, keepdims=True)
        var = jnp.mean(jnp.square(h - mu), axis=-1, keepdims=True)
        h = (h - mu) * jax.lax.rsqrt(var + 1e-5)
        h_ref[...] = (h * gamma_ref[...] + beta_ref[...]).astype(h_ref.dtype)


# ---------------------------------------------------------------------------
# Kernel B: logits = h @ embed_weight.T + out_bias
#   grid = (token tiles, vocab tiles); no cross-step state -> both "parallel".
# ---------------------------------------------------------------------------
def projection_kernel(h_ref, we_ref, bo_ref, o_ref):
    # h_ref:  (tm, E)   normalized activations (compute dtype, same as we_ref)
    # we_ref: (tv, E)   tied-embedding tile, PyTorch layout
    # bo_ref: (1, tv)   output-bias tile (f32)
    # o_ref:  (tm, tv)  logits tile
    logits = jax.lax.dot_general(
        h_ref[...], we_ref[...],
        dimension_numbers=(((1,), (1,)), ((), ())),
        preferred_element_type=jnp.float32)
    o_ref[...] = (logits + bo_ref[...]).astype(o_ref.dtype)


@functools.partial(
    jax.jit,
    static_argnames=("tm", "tv", "th", "compute_dtype", "out_dtype", "vmem_limit"))
def _masked_lm_head_impl(features, dense_w, dense_b, ln_gamma, ln_beta,
                         embed_weight, out_bias, *, tm, tv, th,
                         compute_dtype, out_dtype, vmem_limit):
    T, H = features.shape
    E, _ = dense_w.shape
    V, _ = embed_weight.shape

    Tp = _round_up(T, tm)
    Hp = _round_up(H, th)
    Vp = _round_up(V, tv)

    # Wrapper-side dtype handling: bf16 operands run natively on the MXU and
    # halve the dominant V x E weight stream.
    x = features.astype(compute_dtype)
    wd = dense_w.astype(compute_dtype)
    we = embed_weight.astype(compute_dtype)

    # Pad (instead of asserting) so ragged masked-token counts / odd dims work.
    if Tp != T:
        x = jnp.pad(x, ((0, Tp - T), (0, 0)))
    if Hp != H:
        x = jnp.pad(x, ((0, 0), (0, Hp - H)))
        wd = jnp.pad(wd, ((0, 0), (0, Hp - H)))
    bo = out_bias
    if Vp != V:
        we = jnp.pad(we, ((0, Vp - V), (0, 0)))
        bo = jnp.pad(bo, ((0, Vp - V),))

    bd = dense_b.astype(jnp.float32).reshape(1, E)
    gamma = ln_gamma.astype(jnp.float32).reshape(1, E)
    beta = ln_beta.astype(jnp.float32).reshape(1, E)
    bo = bo.astype(jnp.float32).reshape(1, Vp)

    c_bytes = jnp.dtype(compute_dtype).itemsize
    o_bytes = jnp.dtype(out_dtype).itemsize
    nt, kh, nv = Tp // tm, Hp // th, Vp // tv

    # ---- Kernel A: dense + gelu + LayerNorm --------------------------------
    cost_a = pl.CostEstimate(
        flops=2 * Tp * E * Hp,
        transcendentals=2 * Tp * E,
        bytes_accessed=(Tp * Hp * c_bytes
                        + E * Hp * c_bytes * (nt if kh > 1 else 1)
                        + Tp * E * c_bytes
                        + 4 * 3 * E))
    h = pl.pallas_call(
        dense_gelu_ln_kernel,
        out_shape=jax.ShapeDtypeStruct((Tp, E), compute_dtype),
        grid_spec=pltpu.PrefetchScalarGridSpec(
            num_scalar_prefetch=0,
            grid=(nt, kh),
            in_specs=[
                pl.BlockSpec((tm, th), lambda i, k: (i, k)),  # token x H-chunk
                pl.BlockSpec((E, th), lambda i, k: (0, k)),   # dense weight chunk
                pl.BlockSpec((1, E), lambda i, k: (0, 0)),    # dense bias
                pl.BlockSpec((1, E), lambda i, k: (0, 0)),    # ln gamma
                pl.BlockSpec((1, E), lambda i, k: (0, 0)),    # ln beta
            ],
            out_specs=pl.BlockSpec((tm, E), lambda i, k: (i, 0)),
            scratch_shapes=[pltpu.VMEM((tm, E), jnp.float32)],
        ),
        compiler_params=pltpu.CompilerParams(
            dimension_semantics=("parallel", "arbitrary"),
            vmem_limit_bytes=vmem_limit),
        cost_estimate=cost_a,
    )(x, wd, bd, gamma, beta)

    # ---- Kernel B: tied-embedding projection --------------------------------
    cost_b = pl.CostEstimate(
        flops=2 * Tp * E * Vp,
        transcendentals=0,
        bytes_accessed=(Tp * E * c_bytes
                        + Vp * E * c_bytes * nt   # weight re-streamed per token tile
                        + Tp * Vp * o_bytes
                        + 4 * Vp * nt))
    out = pl.pallas_call(
        projection_kernel,
        out_shape=jax.ShapeDtypeStruct((Tp, Vp), out_dtype),
        grid_spec=pltpu.PrefetchScalarGridSpec(
            num_scalar_prefetch=0,
            grid=(nt, nv),
            in_specs=[
                pl.BlockSpec((tm, E), lambda i, j: (i, 0)),   # activations
                pl.BlockSpec((tv, E), lambda i, j: (j, 0)),   # embedding tile
                pl.BlockSpec((1, tv), lambda i, j: (0, j)),   # output-bias tile
            ],
            out_specs=pl.BlockSpec((tm, tv), lambda i, j: (i, j)),
        ),
        compiler_params=pltpu.CompilerParams(
            # No accumulator / cross-step state: both axes parallel, so the
            # vocab axis shards across v7x's 2 TensorCores even with nt == 1.
            dimension_semantics=("parallel", "parallel"),
            vmem_limit_bytes=vmem_limit),
        cost_estimate=cost_b,
    )(h, we, bo)

    return out[:T, :V]


def masked_lm_head(features, dense_w, dense_b, ln_gamma, ln_beta,
                   embed_weight, out_bias, *, tm=512, tv=2048,
                   compute_dtype=jnp.bfloat16, out_dtype=jnp.bfloat16):
    """features:     [T, hidden_dim]
       dense_w:      [embed_dim, hidden_dim]   (PyTorch nn.Linear layout, NOT transposed)
       embed_weight: [output_dim, embed_dim]   (tied embedding, NOT transposed)
       compute_dtype: matmul operand dtype (bf16 default; pass jnp.float32 or None
                      for a full-precision path)
       out_dtype:     logits dtype (bf16 default to halve the T x V writeback)
    """
    T, H = features.shape
    E, H2 = dense_w.shape
    V, E2 = embed_weight.shape
    assert H == H2 and E == E2
    compute_dtype = jnp.dtype(features.dtype if compute_dtype is None else compute_dtype)
    out_dtype = jnp.dtype(compute_dtype if out_dtype is None else out_dtype)

    c_bytes = compute_dtype.itemsize
    o_bytes = out_dtype.itemsize
    sub = _sublane(compute_dtype)

    # Per-generation VMEM ceiling: ~96 MiB on v5e/v6e (128 MiB physical),
    # ~48 MiB on v7x (64 MiB physical), leaving Mosaic headroom below physical.
    vmem_limit = int(0.75 * _vmem_capacity_bytes())
    budget = max(16 * _MIB, vmem_limit - 8 * _MIB)

    # Tile sizes: clamp for tiny inputs, keep lane (128) / sublane (dtype) alignment.
    tm_eff = _round_up(min(tm, _round_up(T, sub)), sub)
    tv_eff = _round_up(min(tv, _round_up(V, 128)), 128)

    def proj_footprint(tm_, tv_):
        # kernel B: h tile, embedding tile, bias tile, output tile (double-buffered)
        return 2 * (tm_ * E * c_bytes + tv_ * E * c_bytes + tv_ * 4 + tm_ * tv_ * o_bytes)

    # Shrink the vocab tile first (it dominates VMEM), then the token tile.
    while tv_eff > 128 and proj_footprint(tm_eff, tv_eff) > budget:
        tv_eff = _round_up(tv_eff // 2, 128)
    while tm_eff > sub and proj_footprint(tm_eff, tv_eff) > budget:
        tm_eff = _round_up(tm_eff // 2, sub)

    # H-contraction tile for the dense matmul (full H when it fits the budget).
    th_eff = _round_up(H, 128) if H > 128 else H

    def dense_footprint(th_):
        return (2 * (tm_eff * th_ * c_bytes + E * th_ * c_bytes + 3 * E * 4
                     + tm_eff * E * c_bytes)
                + tm_eff * E * 4)

    while th_eff > 128 and dense_footprint(th_eff) > budget:
        th_eff = _round_up(th_eff // 2, 128)

    return _masked_lm_head_impl(
        features, dense_w, dense_b, ln_gamma, ln_beta, embed_weight, out_bias,
        tm=int(tm_eff), tv=int(tv_eff), th=int(th_eff),
        compute_dtype=compute_dtype, out_dtype=out_dtype,
        vmem_limit=int(vmem_limit))


def masked_lm_head_ref(features, dense_w, dense_b, ln_gamma, ln_beta,
                       embed_weight, out_bias):
    x = features @ dense_w.T + dense_b
    x = _gelu_erf(x)
    mu = jnp.mean(x, axis=-1, keepdims=True)
    var = jnp.mean(jnp.square(x - mu), axis=-1, keepdims=True)
    x = (x - mu) * jax.lax.rsqrt(var + 1e-5)
    x = x * ln_gamma + ln_beta
    return x @ embed_weight.T + out_bias


if __name__ == "__main__":
    # Small shapes consistent with the module's forward:
    #   batch=2, seq=8 -> 16 tokens, hidden_dim=32, embed_dim=32, output_dim=128
    batch, seq, hidden_dim, embed_dim, output_dim = 2, 8, 32, 32, 128

    key = jax.random.PRNGKey(0)
    k_feat, k_dw, k_db, k_ew = jax.random.split(key, 4)

    features = jax.random.normal(k_feat, (batch, seq, hidden_dim), jnp.float32)

    # Deterministic synthetic parameters (nn.Linear / LayerNorm / tied embedding shapes).
    dense_w = jax.random.normal(k_dw, (embed_dim, hidden_dim), jnp.float32) * 0.05
    dense_b = jax.random.normal(k_db, (embed_dim,), jnp.float32) * 0.01
    ln_gamma = jnp.ones((embed_dim,), jnp.float32)
    ln_beta = jnp.zeros((embed_dim,), jnp.float32)
    embed_weight = jax.random.normal(k_ew, (output_dim, embed_dim), jnp.float32) * 0.05
    out_bias = jnp.zeros((output_dim,), jnp.float32)  # nn.Parameter(torch.zeros(output_dim))

    # TODO(synk): the masked_tokens boolean gather (data-dependent row count) is
    # done in plain JAX outside the kernel; here we run the masked_tokens=None path.
    feats2d = features.reshape(batch * seq, hidden_dim)

    ref = masked_lm_head_ref(feats2d, dense_w, dense_b, ln_gamma, ln_beta,
                             embed_weight, out_bias)

    # Full-precision path: tight correctness check.
    out_f32 = masked_lm_head(feats2d, dense_w, dense_b, ln_gamma, ln_beta,
                             embed_weight, out_bias,
                             compute_dtype=jnp.float32, out_dtype=jnp.float32)
    out_f32 = jax.block_until_ready(out_f32)
    assert out_f32.shape == (batch * seq, output_dim)
    err32 = jnp.max(jnp.abs(out_f32 - ref))
    assert jnp.allclose(out_f32, ref, atol=1e-4, rtol=1e-4), f"f32 max abs err {err32}"

    # Default fast path (bf16 operands / bf16 logits, f32 accumulation):
    # reduced-precision -> loose tolerance (accuracy tradeoff, not a bug).
    out_bf16 = masked_lm_head(feats2d, dense_w, dense_b, ln_gamma, ln_beta,
                              embed_weight, out_bias)
    out_bf16 = jax.block_until_ready(out_bf16)
    assert out_bf16.shape == (batch * seq, output_dim)
    out_bf16_f = out_bf16.astype(jnp.float32)
    errbf = jnp.max(jnp.abs(out_bf16_f - ref))
    assert jnp.allclose(out_bf16_f, ref, atol=1e-1, rtol=1e-1), f"bf16 max abs err {errbf}"

    print("KERNEL_OK")
</pallas_src>

<mosaic_0001>
module attributes {stable_mosaic.version = 11 : i64} {
  func.func @projection_kernel(%arg0: i32, %arg1: i32, %arg2: memref<16x32xf32, #tpu.memory_space<vmem>>, %arg3: memref<128x32xf32, #tpu.memory_space<vmem>>, %arg4: memref<1x128xf32, #tpu.memory_space<vmem>>, %arg5: memref<16x128xf32, #tpu.memory_space<vmem>>) attributes {dimension_semantics = [#tpu.dimension_semantics<parallel>, #tpu.dimension_semantics<parallel>], iteration_bounds = array<i64: 1, 1>, scalar_prefetch = 0 : i64, scratch_operands = 0 : i64, tpu.core_type = #tpu.core_type<tc>, window_params = [{transform_indices = @transform_0, window_bounds = array<i64: 16, 32>}, {transform_indices = @transform_1, window_bounds = array<i64: 128, 32>}, {transform_indices = @transform_2, window_bounds = array<i64: 1, 128>}, {transform_indices = @transform_3, window_bounds = array<i64: 16, 128>}]} {
    %c0 = arith.constant 0 : index
    %c0_0 = arith.constant 0 : index
    %0 = vector.load %arg2[%c0, %c0_0] : memref<16x32xf32, #tpu.memory_space<vmem>>, vector<16x32xf32>
    %c0_1 = arith.constant 0 : index
    %c0_2 = arith.constant 0 : index
    %1 = vector.load %arg3[%c0_1, %c0_2] : memref<128x32xf32, #tpu.memory_space<vmem>>, vector<128x32xf32>
    %cst = arith.constant dense<0.000000e+00> : vector<16x128xf32>
    %2 = tpu.matmul %0, %1, %cst {dimension_numbers = #tpu.dot_dimension_numbers<[1], [1], [0], [0], [0, 0, 1, 0], [], []>} : vector<16x32xf32>, vector<128x32xf32>, vector<16x128xf32> -> vector<16x128xf32>
    %c0_3 = arith.constant 0 : index
    %c0_4 = arith.constant 0 : index
    %3 = vector.load %arg4[%c0_3, %c0_4] : memref<1x128xf32, #tpu.memory_space<vmem>>, vector<1x128xf32>
    %4 = vector.broadcast %3 : vector<1x128xf32> to vector<16x128xf32>
    %5 = arith.addf %2, %4 : vector<16x128xf32>
    %c0_5 = arith.constant 0 : index
    %c0_6 = arith.constant 0 : index
    %6 = vector.load %arg5[%c0_5, %c0_6] : memref<16x128xf32, #tpu.memory_space<vmem>>, vector<16x128xf32>
    tpu.vector_store %arg5[%c0_5, %c0_6], %5 {strides = array<i32>} : memref<16x128xf32, #tpu.memory_space<vmem>>, vector<16x128xf32>,
    return
  }
  func.func @transform_0(%arg0: i32, %arg1: i32) -> (i32, i32) {
    %c0_i32 = arith.constant 0 : i32
    %c0_i32_0 = arith.constant 0 : i32
    return %arg0, %c0_i32 : i32, i32
  }
  func.func @transform_1(%arg0: i32, %arg1: i32) -> (i32, i32) {
    %c0_i32 = arith.constant 0 : i32
    %c0_i32_0 = arith.constant 0 : i32
    return %arg1, %c0_i32 : i32, i32
  }
  func.func @transform_2(%arg0: i32, %arg1: i32) -> (i32, i32) {
    %c0_i32 = arith.constant 0 : i32
    %c0_i32_0 = arith.constant 0 : i32
    return %c0_i32, %arg1 : i32, i32
  }
  func.func @transform_3(%arg0: i32, %arg1: i32) -> (i32, i32) {
    %c0_i32 = arith.constant 0 : i32
    return %arg0, %arg1 : i32, i32
  }
}

module attributes {stable_mosaic.version = 11 : i64} {
  func.func @dense_gelu_ln_kernel(%arg0: i32, %arg1: i32, %arg2: memref<16x32xf32, #tpu.memory_space<vmem>>, %arg3: memref<32x32xf32, #tpu.memory_space<vmem>>, %arg4: memref<1x32xf32, #tpu.memory_space<vmem>>, %arg5: memref<1x32xf32, #tpu.memory_space<vmem>>, %arg6: memref<1x32xf32, #tpu.memory_space<vmem>>, %arg7: memref<16x32xf32, #tpu.memory_space<vmem>>, %arg8: memref<16x32xf32, #tpu.memory_space<vmem>>) attributes {dimension_semantics = [#tpu.dimension_semantics<parallel>, #tpu.dimension_semantics<arbitrary>], iteration_bounds = array<i64: 1, 1>, scalar_prefetch = 0 : i64, scratch_operands = 1 : i64, tpu.core_type = #tpu.core_type<tc>, window_params = [{transform_indices = @transform_0, window_bounds = array<i64: 16, 32>}, {transform_indices = @transform_1, window_bounds = array<i64: 32, 32>}, {pipeline_mode = #tpu.pipeline_mode<synchronous>, transform_indices = @transform_2, window_bounds = array<i64: 1, 32>}, {pipeline_mode = #tpu.pipeline_mode<synchronous>, transform_indices = @transform_3, window_bounds = array<i64: 1, 32>}, {pipeline_mode = #tpu.pipeline_mode<synchronous>, transform_indices = @transform_4, window_bounds = array<i64: 1, 32>}, {transform_indices = @transform_5, window_bounds = array<i64: 16, 32>}]} {
    %c0_i32 = arith.constant 0 : i32
    %0 = arith.cmpi eq, %arg1, %c0_i32 : i32
    %1 = arith.extui %0 : i1 to i32
    %c0_i32_0 = arith.constant 0 : i32
    %2 = arith.cmpi ne, %1, %c0_i32_0 : i32
    scf.if %2 {
      %cst_10 = arith.constant 0.000000e+00 : f32
      %12 = vector.broadcast %cst_10 : f32 to vector<16x32xf32>
      %c0_11 = arith.constant 0 : index
      %c0_12 = arith.constant 0 : index
      %13 = vector.load %arg8[%c0_11, %c0_12] : memref<16x32xf32, #tpu.memory_space<vmem>>, vector<16x32xf32>
      tpu.vector_store %arg8[%c0_11, %c0_12], %12 {strides = array<i32>} : memref<16x32xf32, #tpu.memory_space<vmem>>, vector<16x32xf32>,
    } else {
    }
    %c0 = arith.constant 0 : index
    %c0_1 = arith.constant 0 : index
    %3 = vector.load %arg8[%c0, %c0_1] : memref<16x32xf32, #tpu.memory_space<vmem>>, vector<16x32xf32>
    %c0_2 = arith.constant 0 : index
    %c0_3 = arith.constant 0 : index
    %4 = vector.load %arg2[%c0_2, %c0_3] : memref<16x32xf32, #tpu.memory_space<vmem>>, vector<16x32xf32>
    %c0_4 = arith.constant 0 : index
    %c0_5 = arith.constant 0 : index
    %5 = vector.load %arg3[%c0_4, %c0_5] : memref<32x32xf32, #tpu.memory_space<vmem>>, vector<32x32xf32>
    %cst = arith.constant dense<0.000000e+00> : vector<16x32xf32>
    %6 = tpu.matmul %4, %5, %cst {dimension_numbers = #tpu.dot_dimension_numbers<[1], [1], [0], [0], [0, 0, 1, 0], [], []>} : vector<16x32xf32>, vector<32x32xf32>, vector<16x32xf32> -> vector<16x32xf32>
    %7 = arith.addf %3, %6 : vector<16x32xf32>
    %c0_6 = arith.constant 0 : index
    %c0_7 = arith.constant 0 : index
    %8 = vector.load %arg8[%c0_6, %c0_7] : memref<16x32xf32, #tpu.memory_space<vmem>>, vector<16x32xf32>
    tpu.vector_store %arg8[%c0_6, %c0_7], %7 {strides = array<i32>} : memref<16x32xf32, #tpu.memory_space<vmem>>, vector<16x32xf32>,
    %c0_i32_8 = arith.constant 0 : i32
    %9 = arith.cmpi eq, %arg1, %c0_i32_8 : i32
    %10 = arith.extui %9 : i1 to i32
    %c0_i32_9 = arith.constant 0 : i32
    %11 = arith.cmpi ne, %10, %c0_i32_9 : i32
    scf.if %11 {
      %c0_10 = arith.constant 0 : index
      %c0_11 = arith.constant 0 : index
      %12 = vector.load %arg8[%c0_10, %c0_11] : memref<16x32xf32, #tpu.memory_space<vmem>>, vector<16x32xf32>
      %c0_12 = arith.constant 0 : index
      %c0_13 = arith.constant 0 : index
      %13 = vector.load %arg4[%c0_12, %c0_13] : memref<1x32xf32, #tpu.memory_space<vmem>>, vector<1x32xf32>
      %14 = vector.broadcast %13 : vector<1x32xf32> to vector<16x32xf32>
      %15 = arith.addf %12, %14 : vector<16x32xf32>
      %cst_14 = arith.constant 5.000000e-01 : f32
      %16 = vector.broadcast %cst_14 : f32 to vector<16x32xf32>
      %17 = arith.mulf %16, %15 : vector<16x32xf32>
      %cst_15 = arith.constant 0.707106769 : f32
      %18 = vector.broadcast %cst_15 : f32 to vector<16x32xf32>
      %19 = arith.mulf %15, %18 : vector<16x32xf32>
      %20 = math.erf %19 : vector<16x32xf32>
      %cst_16 = arith.constant 1.000000e+00 : f32
      %21 = vector.broadcast %cst_16 : f32 to vector<16x32xf32>
      %22 = arith.addf %21, %20 : vector<16x32xf32>
      %23 = arith.mulf %17, %22 : vector<16x32xf32>
      %cst_17 = arith.constant dense<0.000000e+00> : vector<16xf32>
      %24 = vector.multi_reduction <add>, %23, %cst_17 [1] : vector<16x32xf32> to vector<16xf32>
      %25 = vector.shape_cast %24 : vector<16xf32> to vector<16x1xf32>
      %cst_18 = arith.constant 3.200000e+01 : f32
      %26 = vector.broadcast %cst_18 : f32 to vector<16x1xf32>
      %27 = arith.divf %25, %26 : vector<16x1xf32>
      %28 = vector.broadcast %27 : vector<16x1xf32> to vector<16x32xf32>
      %29 = arith.subf %23, %28 : vector<16x32xf32>
      %30 = arith.mulf %29, %29 : vector<16x32xf32>
      %cst_19 = arith.constant dense<0.000000e+00> : vector<16xf32>
      %31 = vector.multi_reduction <add>, %30, %cst_19 [1] : vector<16x32xf32> to vector<16xf32>
      %32 = vector.shape_cast %31 : vector<16xf32> to vector<16x1xf32>
      %cst_20 = arith.constant 3.200000e+01 : f32
      %33 = vector.broadcast %cst_20 : f32 to vector<16x1xf32>
      %34 = arith.divf %32, %33 : vector<16x1xf32>
      %35 = vector.broadcast %27 : vector<16x1xf32> to vector<16x32xf32>
      %36 = arith.subf %23, %35 : vector<16x32xf32>
      %cst_21 = arith.constant 9.99999974E-6 : f32
      %37 = vector.broadcast %cst_21 : f32 to vector<16x1xf32>
      %38 = arith.addf %34, %37 : vector<16x1xf32>
      %39 = math.rsqrt %38 : vector<16x1xf32>
      %40 = vector.broadcast %39 : vector<16x1xf32> to vector<16x32xf32>
      %41 = arith.mulf %36, %40 : vector<16x32xf32>
      %c0_22 = arith.constant 0 : index
      %c0_23 = arith.constant 0 : index
      %42 = vector.load %arg5[%c0_22, %c0_23] : memref<1x32xf32, #tpu.memory_space<vmem>>, vector<1x32xf32>
      %43 = vector.broadcast %42 : vector<1x32xf32> to vector<16x32xf32>
      %44 = arith.mulf %41, %43 : vector<16x32xf32>
      %c0_24 = arith.constant 0 : index
      %c0_25 = arith.constant 0 : index
      %45 = vector.load %arg6[%c0_24, %c0_25] : memref<1x32xf32, #tpu.memory_space<vmem>>, vector<1x32xf32>
      %46 = vector.broadcast %45 : vector<1x32xf32> to vector<16x32xf32>
      %47 = arith.addf %44, %46 : vector<16x32xf32>
      %c0_26 = arith.constant 0 : index
      %c0_27 = arith.constant 0 : index
      %48 = vector.load %arg7[%c0_26, %c0_27] : memref<16x32xf32, #tpu.memory_space<vmem>>, vector<16x32xf32>
      tpu.vector_store %arg7[%c0_26, %c0_27], %47 {strides = array<i32>} : memref<16x32xf32, #tpu.memory_space<vmem>>, vector<16x32xf32>,
    } else {
    }
    return
  }
  func.func @transform_0(%arg0: i32, %arg1: i32) -> (i32, i32) {
    %c0_i32 = arith.constant 0 : i32
    return %arg0, %arg1 : i32, i32
  }
  func.func @transform_1(%arg0: i32, %arg1: i32) -> (i32, i32) {
    %c0_i32 = arith.constant 0 : i32
    %c0_i32_0 = arith.constant 0 : i32
    return %c0_i32, %arg1 : i32, i32
  }
  func.func @transform_2(%arg0: i32, %arg1: i32) -> (i32, i32) {
    %c0_i32 = arith.constant 0 : i32
    %c0_i32_0 = arith.constant 0 : i32
    %c0_i32_1 = arith.constant 0 : i32
    return %c0_i32, %c0_i32_0 : i32, i32
  }
  func.func @transform_3(%arg0: i32, %arg1: i32) -> (i32, i32) {
    %c0_i32 = arith.constant 0 : i32
    %c0_i32_0 = arith.constant 0 : i32
    %c0_i32_1 = arith.constant 0 : i32
    return %c0_i32, %c0_i32_0 : i32, i32
  }
  func.func @transform_4(%arg0: i32, %arg1: i32) -> (i32, i32) {
    %c0_i32 = arith.constant 0 : i32
    %c0_i32_0 = arith.constant 0 : i32
    %c0_i32_1 = arith.constant 0 : i32
    return %c0_i32, %c0_i32_0 : i32, i32
  }
  func.func @transform_5(%arg0: i32, %arg1: i32) -> (i32, i32) {
    %c0_i32 = arith.constant 0 : i32
    %c0_i32_0 = arith.constant 0 : i32
    return %arg0, %c0_i32 : i32, i32
  }
}

</mosaic_0001>

<llo_original>
// kernel: _masked_lm_head_impl.3
$region0: #{_masked_lm_head_impl.3}
  #allocation0 [shape = 'u32[]', space=smem, size = 0x4, offset = 0x4, fixed_abs, tag = 'smem constant byte address 0x4 - core index']
  #allocation1 [shape = 'u32[144,128]{1,0:T(1,128)}', space=vmem, size = 0x12000, scoped, tag = 'internal scratch']
  %s0 = inlined_call_operand.vmem [shape: f32[16,32], index: 0, kind: input, shape index: {}]
  %s1 = inlined_call_operand.vmem [shape: f32[128,32], index: 1, kind: input, shape index: {}]
  %s2 = inlined_call_operand.vmem [shape: f32[1,128], index: 2, kind: input, shape index: {}]
  %s3 = inlined_call_operand.hbm [shape: f32[16,128], index: 3, kind: output, shape index: {}]
  %s4 = sld [smem:[#allocation0]]
  $region22: #{_masked_lm_head_impl.3} parent=0
    _
  %s6 = ssub.s32 1, %s4
  %s7 = scalar_select 0, %s6, %s4
  $region1: #{_masked_lm_head_impl.3} parent=0
    #allocation2 [shape = 'u8[8192]{0}', space=vmem, size = 0x2000, scoped, tag = 'output window, operand 0, single buffered']
    #allocation3 [shape = 's32[1]{0}', space=sflag, size = 0x4, scoped, tag = 'scoped memory for _masked_lm_head_impl.3']
    %8 = vsyncpa [#allocation3], 0
    // Predicated region
    $region2: #{_masked_lm_head_impl.3} parent=1 // pred_check
      _
    $region3: #{_masked_lm_head_impl.3} parent=1 // pred_check_branch
      %10 = sbr.rel (0) target = $region5
    $region4: #{_masked_lm_head_impl.3} parent=1 // pred_region
      _
    $region5: #{_masked_lm_head_impl.3} parent=1 // pred_fallthru
      _
    // Predicated region
    $region6: #{_masked_lm_head_impl.3} parent=1 // pred_check
      _
    $region7: #{_masked_lm_head_impl.3} parent=1 // pred_check_branch
      %12 = sbr.rel (0) target = $region9
    $region8: #{_masked_lm_head_impl.3} parent=1 // pred_region
      _
    $region9: #{_masked_lm_head_impl.3} parent=1 // pred_fallthru
      _
    // Predicated region
    $region10: #{_masked_lm_head_impl.3} parent=1 // pred_check
      _
    $region11: #{_masked_lm_head_impl.3} parent=1 // pred_check_branch
      %14 = sbr.rel (0) target = $region13
    $region12: #{_masked_lm_head_impl.3} parent=1 // pred_region
      _
    $region13: #{_masked_lm_head_impl.3} parent=1 // pred_fallthru
      _
    %v15 = vld [vmem:[%s0] sm:$0xff]
    %v16 = vld [vmem:[%s0 + $0x8] sm:$0xff]
    %v17 = vld [vmem:[%s1] sm:$0xff]
    %v18 = vld [vmem:[%s1 + $0x8] sm:$0xff]
    %v19 = vld [vmem:[%s1 + $0x10] sm:$0xff]
    %v20 = vld [vmem:[%s1 + $0x18] sm:$0xff]
    %v21 = vld [vmem:[%s1 + $0x20] sm:$0xff]
    %v22 = vld [vmem:[%s1 + $0x28] sm:$0xff]
    %v23 = vld [vmem:[%s1 + $0x30] sm:$0xff]
    %v24 = vld [vmem:[%s1 + $0x38] sm:$0xff]
    %v25 = vld [vmem:[%s1 + $0x40] sm:$0xff]
    %v26 = vld [vmem:[%s1 + $0x48] sm:$0xff]
    %v27 = vld [vmem:[%s1 + $0x50] sm:$0xff]
    %v28 = vld [vmem:[%s1 + $0x58] sm:$0xff]
    %v29 = vld [vmem:[%s1 + $0x60] sm:$0xff]
    %v30 = vld [vmem:[%s1 + $0x68] sm:$0xff]
    %v31 = vld [vmem:[%s1 + $0x70] sm:$0xff]
    %v32 = vld [vmem:[%s1 + $0x78] sm:$0xff]
    %v33 = vld [vmem:[%s2] sm:$0x1]
    %v35 = vlaneseq
    %v36 = vshrl.u32 %v35, 7
    %v37 = vsub.s32 0, %v36
    %v38 = vrot.slane %v33, %v37
    %vm40 = vcmask 261120
    %v42 = vsel %vm40, %v15, 0
    %v45 = vsel %vm40, %v16, 0
    %v48 = vsel %vm40, %v17, 0
    %v51 = vsel %vm40, %v18, 0
    %v54 = vsel %vm40, %v19, 0
    %v57 = vsel %vm40, %v20, 0
    %v60 = vsel %vm40, %v21, 0
    %v63 = vsel %vm40, %v22, 0
    %v66 = vsel %vm40, %v23, 0
    %v69 = vsel %vm40, %v24, 0
    %v72 = vsel %vm40, %v25, 0
    %v75 = vsel %vm40, %v26, 0
    %v78 = vsel %vm40, %v27, 0
    %v81 = vsel %vm40, %v28, 0
    %v84 = vsel %vm40, %v29, 0
    %v87 = vsel %vm40, %v30, 0
    %v90 = vsel %vm40, %v31, 0
    %v93 = vsel %vm40, %v32, 0
    %95 = vmatprep.subr.mxu0 0.0
    %96 = vmatpush1.xpose.msra.mxu0 %v93
    %97 = vmatprep.subr.mxu0 0.0
    %98 = vmatpush1.xpose.msra.mxu0 %v90
    %99 = vmatprep.subr.mxu0 0.0
    %100 = vmatpush1.xpose.msra.mxu0 %v87
    %101 = vmatprep.subr.mxu0 0.0
    %102 = vmatpush1.xpose.msra.mxu0 %v84
    %103 = vmatprep.subr.mxu0 0.0
    %104 = vmatpush1.xpose.msra.mxu0 %v81
    %105 = vmatprep.subr.mxu0 0.0
    %106 = vmatpush1.xpose.msra.mxu0 %v78
    %107 = vmatprep.subr.mxu0 0.0
    %108 = vmatpush1.xpose.msra.mxu0 %v75
    %109 = vmatprep.subr.mxu0 0.0
    %110 = vmatpush1.xpose.msra.mxu0 %v72
    %111 = vmatprep.subr.mxu0 0.0
    %112 = vmatpush1.xpose.msra.mxu0 %v69
    %113 = vmatprep.subr.mxu0 0.0
    %114 = vmatpush1.xpose.msra.mxu0 %v66
    %115 = vmatprep.subr.mxu0 0.0
    %116 = vmatpush1.xpose.msra.mxu0 %v63
    %117 = vmatprep.subr.mxu0 0.0
    %118 = vmatpush1.xpose.msra.mxu0 %v60
    %119 = vmatprep.subr.mxu0 0.0
    %120 = vmatpush1.xpose.msra.mxu0 %v57
    %121 = vmatprep.subr.mxu0 0.0
    %122 = vmatpush1.xpose.msra.mxu0 %v54
    %123 = vmatprep.subr.mxu0 0.0
    %124 = vmatpush1.xpose.msra.mxu0 %v51
    %125 = vmatprep.subr.mxu0 0.0
    %126 = vmatpush1.xpose.msra.mxu0 %v48
    %127 = vmatprep.subr.mxu0 0.0
    %128 = vmatpush2.xpose.msra.mxu0 0.0
    %129 = vmatprep.subr.mxu0 0.0
    %130 = vmatpush2.xpose.msra.mxu0 0.0
    %131 = vmatprep.subr.mxu0 0.0
    %132 = vmatpush2.xpose.msra.mxu0 0.0
    %133 = vmatprep.subr.mxu0 0.0
    %134 = vmatpush2.xpose.msra.mxu0 0.0
    %135 = vmatprep.subr.mxu0 0.0
    %136 = vmatpush2.xpose.msra.mxu0 0.0
    %137 = vmatprep.subr.mxu0 0.0
    %138 = vmatpush2.xpose.msra.mxu0 0.0
    %139 = vmatprep.subr.mxu0 0.0
    %140 = vmatpush2.xpose.msra.mxu0 0.0
    %141 = vmatprep.subr.mxu0 0.0
    %142 = vmatpush2.xpose.msra.mxu0 0.0
    %143 = vmatprep.subr.mxu0 0.0
    %144 = vmatpush2.xpose.msra.mxu0 0.0
    %145 = vmatprep.subr.mxu0 0.0
    %146 = vmatpush2.xpose.msra.mxu0 0.0
    %147 = vmatprep.subr.mxu0 0.0
    %148 = vmatpush2.xpose.msra.mxu0 0.0
    %149 = vmatprep.subr.mxu0 0.0
    %150 = vmatpush2.xpose.msra.mxu0 0.0
    %151 = vmatprep.subr.mxu0 0.0
    %152 = vmatpush2.xpose.msra.mxu0 0.0
    %153 = vmatprep.subr.mxu0 0.0
    %154 = vmatpush2.xpose.msra.mxu0 0.0
    %155 = vmatprep.subr.mxu0 0.0
    %156 = vmatpush2.xpose.msra.mxu0 0.0
    %157 = vmatprep.subr.mxu0 0.0
    %158 = vmatpush2.xpose.msra.mxu0 0.0
    %159 = vmatprep.mubr.f32.mxu0 0.0
    %160 = vmatmul.mubr.f32.gmra.mxu0 %v42
    %v161 = vpop.f32.mrf.mxu0
    %v162 = vadd.f32 %v38, %v161
    %v163 = vpop.f32.mrf.mxu0
    %164 = vmatprep.mubr.f32.mxu0 0.0
    %165 = vmatmul.mubr.f32.gmra.mxu0 %v45
    %v166 = vpop.f32.mrf.mxu0
    %v167 = vadd.f32 %v38, %v166
    %v168 = vpop.f32.mrf.mxu0
    %169 = vdwg.mxu0
    %170 = vst [vmem:[#allocation2] sm:$0xff] %v162
    %171 = vst [vmem:[#allocation2 + $0x8] sm:$0xff] %v167
    // Predicated region
    $region14: #{_masked_lm_head_impl.3} parent=1 // pred_check
      _
    $region15: #{_masked_lm_head_impl.3} parent=1 // pred_check_branch
      %173 = sbr.rel (0) target = $region17
    $region16: #{_masked_lm_head_impl.3} parent=1 // pred_region
      %s175 = ssub.s32 256, 256
      %176 = vsyncadd [#allocation3], %s175
      %s177 = sshll.u32 [#allocation2], 4
      %s178 = int_to_ptr.vmem [resolvable:$true] %s177
      %183 = dma.vmem_to_hbm [thread:$0]  %s178, 256, %s3, [#allocation3], 128, 128, 8
    $region17: #{_masked_lm_head_impl.3} parent=1 // pred_fallthru
      _
    // Predicated region
    $region18: #{_masked_lm_head_impl.3} parent=1 // pred_check
      _
    $region19: #{_masked_lm_head_impl.3} parent=1 // pred_check_branch
      %185 = sbr.rel (0) target = $region21
    $region20: #{_masked_lm_head_impl.3} parent=1 // pred_region
      %186 = dma.done [#allocation3], 256
    $region21: #{_masked_lm_head_impl.3} parent=1 // pred_fallthru
      _
    %187 = vsyncpa [#allocation3], 1

// kernel: _masked_lm_head_impl.2
$region0: #{_masked_lm_head_impl.2}
  #allocation0 [shape = 'u32[]', space=smem, size = 0x4, offset = 0x4, fixed_abs, tag = 'smem constant byte address 0x4 - core index']
  #allocation1 [shape = 'u32[144,128]{1,0:T(1,128)}', space=vmem, size = 0x12000, scoped, tag = 'internal scratch']
  #allocation2 [shape = 'f32[16,32]{1,0:T(8,128)}', space=vmem, size = 0x2000, scoped, tag = 'scratch operand']
  %s0 = inlined_call_operand.hbm [shape: f32[16,32], index: 0, kind: input, shape index: {}]
  %s1 = inlined_call_operand.hbm [shape: f32[32,32], index: 1, kind: input, shape index: {}]
  %s2 = inlined_call_operand.vmem [shape: f32[1,32], index: 2, kind: input, shape index: {}]
  %s3 = inlined_call_operand.vmem [shape: f32[1,32], index: 3, kind: input, shape index: {}]
  %s4 = inlined_call_operand.vmem [shape: f32[1,32], index: 4, kind: input, shape index: {}]
  %s5 = inlined_call_operand.vmem [shape: f32[16,32], index: 5, kind: output, shape index: {}]
  %s6 = sld [smem:[#allocation0]]
  $region46: #{_masked_lm_head_impl.2} parent=0
    _
  %s8 = ssub.s32 1, %s6
  %s9 = scalar_select 0, %s8, %s6
  $region1: #{_masked_lm_head_impl.2} parent=0
    #allocation3 [shape = 'u8[8192]{0}', space=vmem, size = 0x2000, scoped, tag = 'input window, operand 0, single buffered']
    #allocation4 [shape = 's32[1]{0}', space=sflag, size = 0x4, scoped, tag = 'scoped memory for _masked_lm_head_impl.2']
    #allocation5 [shape = 'u8[16384]{0}', space=vmem, size = 0x4000, scoped, tag = 'input window, operand 1, single buffered']
    #allocation6 [shape = 's32[1]{0}', space=sflag, size = 0x4, scoped, tag = 'scoped memory for _masked_lm_head_impl.2']
    %10 = vsyncpa [#allocation4], 0
    %11 = vsyncpa [#allocation6], 0
    // Predicated region
    $region2: #{_masked_lm_head_impl.2} parent=1 // pred_check
      _
    $region3: #{_masked_lm_head_impl.2} parent=1 // pred_check_branch
      %13 = sbr.rel (0) target = $region5
    $region4: #{_masked_lm_head_impl.2} parent=1 // pred_region
      %s15 = ssub.s32 256, 256
      %16 = vsyncadd [#allocation4], %s15
      %s17 = sshll.u32 [#allocation3], 4
      %s18 = int_to_ptr.vmem [resolvable:$true] %s17
      %23 = dma.hbm_to_vmem [thread:$0]  %s0, 256, %s18, [#allocation4], 128, 128, 8
    $region5: #{_masked_lm_head_impl.2} parent=1 // pred_fallthru
      _
    // Predicated region
    $region6: #{_masked_lm_head_impl.2} parent=1 // pred_check
      _
    $region7: #{_masked_lm_head_impl.2} parent=1 // pred_check_branch
      %25 = sbr.rel (0) target = $region9
    $region8: #{_masked_lm_head_impl.2} parent=1 // pred_region
      %s27 = ssub.s32 512, 512
      %28 = vsyncadd [#allocation6], %s27
      %s29 = sshll.u32 [#allocation5], 4
      %s30 = int_to_ptr.vmem [resolvable:$true] %s29
      %35 = dma.hbm_to_vmem [thread:$0]  %s1, 512, %s30, [#allocation6], 128, 128, 8
    $region9: #{_masked_lm_head_impl.2} parent=1 // pred_fallthru
      _
    // Predicated region
    $region10: #{_masked_lm_head_impl.2} parent=1 // pred_check
      _
    $region11: #{_masked_lm_head_impl.2} parent=1 // pred_check_branch
      %37 = sbr.rel (0) target = $region13
    $region12: #{_masked_lm_head_impl.2} parent=1 // pred_region
      _
    $region13: #{_masked_lm_head_impl.2} parent=1 // pred_fallthru
      _
    // Predicated region
    $region14: #{_masked_lm_head_impl.2} parent=1 // pred_check
      _
    $region15: #{_masked_lm_head_impl.2} parent=1 // pred_check_branch
      %39 = sbr.rel (0) target = $region17
    $region16: #{_masked_lm_head_impl.2} parent=1 // pred_region
      _
    $region17: #{_masked_lm_head_impl.2} parent=1 // pred_fallthru
      _
    // Predicated region
    $region18: #{_masked_lm_head_impl.2} parent=1 // pred_check
      _
    $region19: #{_masked_lm_head_impl.2} parent=1 // pred_check_branch
      %41 = sbr.rel (0) target = $region21
    $region20: #{_masked_lm_head_impl.2} parent=1 // pred_region
      _
    $region21: #{_masked_lm_head_impl.2} parent=1 // pred_fallthru
      _
    // Predicated region
    $region22: #{_masked_lm_head_impl.2} parent=1 // pred_check
      _
    $region23: #{_masked_lm_head_impl.2} parent=1 // pred_check_branch
      %43 = sbr.rel (0) target = $region25
    $region24: #{_masked_lm_head_impl.2} parent=1 // pred_region
      %44 = dma.done [#allocation4], 256
    $region25: #{_masked_lm_head_impl.2} parent=1 // pred_fallthru
      _
    // Predicated region
    $region26: #{_masked_lm_head_impl.2} parent=1 // pred_check
      _
    $region27: #{_masked_lm_head_impl.2} parent=1 // pred_check_branch
      %46 = sbr.rel (0) target = $region29
    $region28: #{_masked_lm_head_impl.2} parent=1 // pred_region
      %47 = dma.done [#allocation6], 512
    $region29: #{_masked_lm_head_impl.2} parent=1 // pred_fallthru
      _
    %p48 = scmp.eq.s32.totalorder 0, 0
    // Predicated region
    $region30: #{_masked_lm_head_impl.2} parent=1 // pred_check
      %p49 = pneg %p48
    $region31: #{_masked_lm_head_impl.2} parent=1 // pred_check_branch
      %51 = sbr.rel (%p49) target = $region33
    $region32: #{_masked_lm_head_impl.2} parent=1 // pred_region
      %vm52 = vcmask 261120
      %53 = vst.msk [vmem:[#allocation2] sm:$0xff] %vm52, 0.0
      %54 = vst.msk [vmem:[#allocation2 + $0x8] sm:$0xff] %vm52, 0.0
    $region33: #{_masked_lm_head_impl.2} parent=1 // pred_fallthru
      _
    %v55 = vld [vmem:[#allocation2] sm:$0xff]
    %v56 = vld [vmem:[#allocation2 + $0x8] sm:$0xff]
    %v57 = vld [vmem:[#allocation3] sm:$0xff]
    %v58 = vld [vmem:[#allocation3 + $0x8] sm:$0xff]
    %v59 = vld [vmem:[#allocation5] sm:$0xff]
    %v60 = vld [vmem:[#allocation5 + $0x8] sm:$0xff]
    %v61 = vld [vmem:[#allocation5 + $0x10] sm:$0xff]
    %v62 = vld [vmem:[#allocation5 + $0x18] sm:$0xff]
    %vm63 = vcmask 261120
    %v65 = vsel %vm63, %v57, 0
    %v68 = vsel %vm63, %v58, 0
    %v71 = vsel %vm63, %v59, 0
    %v74 = vsel %vm63, %v60, 0
    %v77 = vsel %vm63, %v61, 0
    %v80 = vsel %vm63, %v62, 0
    %82 = vmatprep.subr.mxu0 0.0
    %83 = vmatpush1.xpose.msra.mxu0 0.0
    %84 = vmatprep.subr.mxu0 0.0
    %85 = vmatpush1.xpose.msra.mxu0 0.0
    %86 = vmatprep.subr.mxu0 0.0
    %87 = vmatpush1.xpose.msra.mxu0 0.0
    %88 = vmatprep.subr.mxu0 0.0
    %89 = vmatpush1.xpose.msra.mxu0 0.0
    %90 = vmatprep.subr.mxu0 0.0
    %91 = vmatpush1.xpose.msra.mxu0 0.0
    %92 = vmatprep.subr.mxu0 0.0
    %93 = vmatpush1.xpose.msra.mxu0 0.0
    %94 = vmatprep.subr.mxu0 0.0
    %95 = vmatpush1.xpose.msra.mxu0 0.0
    %96 = vmatprep.subr.mxu0 0.0
    %97 = vmatpush1.xpose.msra.mxu0 0.0
    %98 = vmatprep.subr.mxu0 0.0
    %99 = vmatpush1.xpose.msra.mxu0 0.0
    %100 = vmatprep.subr.mxu0 0.0
    %101 = vmatpush1.xpose.msra.mxu0 0.0
    %102 = vmatprep.subr.mxu0 0.0
    %103 = vmatpush1.xpose.msra.mxu0 0.0
    %104 = vmatprep.subr.mxu0 0.0
    %105 = vmatpush1.xpose.msra.mxu0 0.0
    %106 = vmatprep.subr.mxu0 0.0
    %107 = vmatpush1.xpose.msra.mxu0 %v80
    %108 = vmatprep.subr.mxu0 0.0
    %109 = vmatpush1.xpose.msra.mxu0 %v77
    %110 = vmatprep.subr.mxu0 0.0
    %111 = vmatpush1.xpose.msra.mxu0 %v74
    %112 = vmatprep.subr.mxu0 0.0
    %113 = vmatpush1.xpose.msra.mxu0 %v71
    %114 = vmatprep.subr.mxu0 0.0
    %115 = vmatpush2.xpose.msra.mxu0 0.0
    %116 = vmatprep.subr.mxu0 0.0
    %117 = vmatpush2.xpose.msra.mxu0 0.0
    %118 = vmatprep.subr.mxu0 0.0
    %119 = vmatpush2.xpose.msra.mxu0 0.0
    %120 = vmatprep.subr.mxu0 0.0
    %121 = vmatpush2.xpose.msra.mxu0 0.0
    %122 = vmatprep.subr.mxu0 0.0
    %123 = vmatpush2.xpose.msra.mxu0 0.0
    %124 = vmatprep.subr.mxu0 0.0
    %125 = vmatpush2.xpose.msra.mxu0 0.0
    %126 = vmatprep.subr.mxu0 0.0
    %127 = vmatpush2.xpose.msra.mxu0 0.0
    %128 = vmatprep.subr.mxu0 0.0
    %129 = vmatpush2.xpose.msra.mxu0 0.0
    %130 = vmatprep.subr.mxu0 0.0
    %131 = vmatpush2.xpose.msra.mxu0 0.0
    %132 = vmatprep.subr.mxu0 0.0
    %133 = vmatpush2.xpose.msra.mxu0 0.0
    %134 = vmatprep.subr.mxu0 0.0
    %135 = vmatpush2.xpose.msra.mxu0 0.0
    %136 = vmatprep.subr.mxu0 0.0
    %137 = vmatpush2.xpose.msra.mxu0 0.0
    %138 = vmatprep.subr.mxu0 0.0
    %139 = vmatpush2.xpose.msra.mxu0 0.0
    %140 = vmatprep.subr.mxu0 0.0
    %141 = vmatpush2.xpose.msra.mxu0 0.0
    %142 = vmatprep.subr.mxu0 0.0
    %143 = vmatpush2.xpose.msra.mxu0 0.0
    %144 = vmatprep.subr.mxu0 0.0
    %145 = vmatpush2.xpose.msra.mxu0 0.0
    %146 = vmatprep.mubr.f32.mxu0 0.0
    %147 = vmatmul.mubr.f32.gmra.mxu0 %v65
    %v148 = vpop.f32.mrf.mxu0
    %v149 = vadd.f32 0.0, %v148
    %v150 = vpop.f32.mrf.mxu0
    %151 = vmatprep.mubr.f32.mxu0 0.0
    %152 = vmatmul.mubr.f32.gmra.mxu0 %v68
    %v153 = vpop.f32.mrf.mxu0
    %v154 = vadd.f32 0.0, %v153
    %v155 = vpop.f32.mrf.mxu0
    %156 = vdwg.mxu0
    %v157 = vadd.f32 %v55, %v149
    %v158 = vadd.f32 %v56, %v154
    %159 = vst.msk [vmem:[#allocation2] sm:$0xff] %vm63, %v157
    %160 = vst.msk [vmem:[#allocation2 + $0x8] sm:$0xff] %vm63, %v158
    // Predicated region
    $region34: #{_masked_lm_head_impl.2} parent=1 // pred_check
      %p161 = pneg %p48
    $region35: #{_masked_lm_head_impl.2} parent=1 // pred_check_branch
      %163 = sbr.rel (%p161) target = $region37
    $region36: #{_masked_lm_head_impl.2} parent=1 // pred_region
      %v164 = vld [vmem:[#allocation2] sm:$0xff]
      %v165 = vld [vmem:[#allocation2 + $0x8] sm:$0xff]
      %v166 = vld [vmem:[%s2] sm:$0x1]
      %v168 = vlaneseq
      %v169 = vshrl.u32 %v168, 7
      %v170 = vsub.s32 0, %v169
      %v171 = vrot.slane %v166, %v170
      %v173 = vadd.f32 %v164, %v171
      %v174 = vadd.f32 %v165, %v171
      %v175 = vmul.f32 %v173, 0.5
      %v176 = vmul.f32 %v174, 0.5
      %v177 = vmul.f32 %v173, 0.70710677
      %v178 = vmul.f32 %v174, 0.70710677
      %v179 = verf.f32.pop %v177
      %v180 = verf.f32.pop %v178
      %v181 = vadd.f32 %v179, 1.0
      %v182 = vadd.f32 %v180, 1.0
      %v183 = vmul.f32 %v175, %v181
      %v184 = vmul.f32 %v176, %v182
      %v185 = vsel %vm63, %v183, 0.0
      %186 = vadd.xlane.f32.xlu0 %v185
      %v187 = vpop.xlane.xlu0 %186
      %v188 = vsel %vm63, %v184, 0.0
      %189 = vadd.xlane.f32.xlu0 %v188
      %v190 = vpop.xlane.xlu0 %189
      %v191 = vrcp.pop 32.0
      %v192 = vmul.f32 %v187, %v191
      %v193 = vmul.f32 %v190, %v191
      %v194 = vsub.f32 %v183, %v192
      %v195 = vsub.f32 %v184, %v193
      %v196 = vmul.f32 %v194, %v194
      %v197 = vmul.f32 %v195, %v195
      %v198 = vsel %vm63, %v196, 0.0
      %199 = vadd.xlane.f32.xlu0 %v198
      %v200 = vpop.xlane.xlu0 %199
      %v201 = vsel %vm63, %v197, 0.0
      %202 = vadd.xlane.f32.xlu0 %v201
      %v203 = vpop.xlane.xlu0 %202
      %v204 = vmul.f32 %v200, %v191
      %v205 = vmul.f32 %v203, %v191
      %v206 = vadd.f32 %v204, 1e-05
      %v207 = vadd.f32 %v205, 1e-05
      %v208 = vrsqrt.pop %v206
      %v209 = vrsqrt.pop %v207
      %v210 = vmul.f32 %v194, %v208
      %v211 = vmul.f32 %v195, %v209
      %v212 = vld [vmem:[%s3] sm:$0x1]
      %v214 = vlaneseq
      %v215 = vshrl.u32 %v214, 7
      %v216 = vsub.s32 0, %v215
      %v217 = vrot.slane %v212, %v216
      %v219 = vmul.f32 %v210, %v217
      %v220 = vmul.f32 %v211, %v217
      %v221 = vld [vmem:[%s4] sm:$0x1]
      %v223 = vlaneseq
      %v224 = vshrl.u32 %v223, 7
      %v225 = vsub.s32 0, %v224
      %v226 = vrot.slane %v221, %v225
      %v228 = vadd.f32 %v219, %v226
      %v229 = vadd.f32 %v220, %v226
      %230 = vst.msk [vmem:[%s5] sm:$0xff] %vm63, %v228
      %231 = vst.msk [vmem:[%s5 + $0x8] sm:$0xff] %vm63, %v229
    $region37: #{_masked_lm_head_impl.2} parent=1 // pred_fallthru
      _
    // Predicated region
    $region38: #{_masked_lm_head_impl.2} parent=1 // pred_check
      _
    $region39: #{_masked_lm_head_impl.2} parent=1 // pred_check_branch
      %233 = sbr.rel (0) target = $region41
    $region40: #{_masked_lm_head_impl.2} parent=1 // pred_region
      _
    $region41: #{_masked_lm_head_impl.2} parent=1 // pred_fallthru
      _
    // Predicated region
    $region42: #{_masked_lm_head_impl.2} parent=1 // pred_check
      _
    $region43: #{_masked_lm_head_impl.2} parent=1 // pred_check_branch
      %235 = sbr.rel (0) target = $region45
    $region44: #{_masked_lm_head_impl.2} parent=1 // pred_region
      _
    $region45: #{_masked_lm_head_impl.2} parent=1 // pred_fallthru
      _
    %236 = vsyncpa [#allocation4], 1
    %237 = vsyncpa [#allocation6], 1

</llo_original>
